<compile_context>
chip_gen: v7x
topology: tpu7x:2x2x1
jax: 0.10.0
libtpu: 0.0.40
codegen_flags: <defaults>
</compile_context>

<pallas_src>
import functools

import jax
import jax.numpy as jnp
from jax.experimental import pallas as pl
from jax.experimental.pallas import tpu as pltpu

KH = KW = 3          # kernel_size=3
SH = SW = 3          # PyTorch MaxPool2d: stride defaults to kernel_size


def _pad(v, m):
    return -(-v // m) * m


@functools.lru_cache(maxsize=None)
def _tpu_config():
    """(vmem_budget_bytes, vmem_limit_bytes, tensorcores_per_chip), generation-aware."""
    phys = 64 * 1024 * 1024          # conservative default (v7x-class per-core VMEM)
    cores = 1
    try:
        phys = int(pltpu.get_tpu_info().vmem_capacity_bytes)
    except Exception:
        pass
    try:
        kind = jax.devices()[0].device_kind.lower()
        if "7" in kind:              # v7x-class: 2 TensorCores per chip
            cores = 2
    except Exception:
        pass
    limit = phys // 2                # 64 MiB on 128-MiB chips, 32 MiB on 64-MiB chips
    budget = (3 * limit) // 4        # leave headroom for compiler-internal scratch
    return budget, limit, cores


def _maxpool3x3_kernel(x_ref, o_ref, *, mm_dtype):
    # x_ref: (B, H, W)    o_ref: (B, H_out, W_out)
    B, H_out, W_out = o_ref.shape
    W = x_ref.shape[-1]

    # ---- KH reduction: three stride-3 sublane reads straight from the ref ----
    h0 = x_ref[:, pl.ds(0, H_out, 3), :]
    h1 = x_ref[:, pl.ds(1, H_out, 3), :]
    h2 = x_ref[:, pl.ds(2, H_out, 3), :]
    hmax = jnp.maximum(jnp.maximum(h0, h1), h2)              # (B, H_out, W)

    # ---- flatten rows once so the lane selection is a single tall-M matmul ----
    hmax2 = hmax.reshape(B * H_out, W)                       # (B*H_out, W)

    # ---- KW sliding max centred on each window via two XLU lane rotations ----
    # wmax2[w] = max(hmax2[w-1], hmax2[w], hmax2[w+1]); wrapped lanes 0 and W-1 are
    # never selected below, and using both +1 and (W-1) shifts covers both neighbours
    # regardless of the rotation direction convention.
    left = pltpu.roll(hmax2, 1, axis=1)
    right = pltpu.roll(hmax2, W - 1, axis=1)
    wmax2 = jnp.maximum(jnp.maximum(hmax2, left), right)     # (B*H_out, W)

    # ---- stride-3 lane subsample: one 2-D one-hot selection matmul on the MXU ----
    lane = jax.lax.broadcasted_iota(jnp.int32, (W, W_out), 0)
    outc = jax.lax.broadcasted_iota(jnp.int32, (W, W_out), 1)
    sel = (lane == 3 * outc + 1).astype(mm_dtype)            # (W, W_out), picks window centres
    res2 = jnp.dot(wmax2.astype(mm_dtype), sel,
                   preferred_element_type=jnp.float32)       # (B*H_out, W_out), exact selection
    # TODO(synk): a non-finite input (Inf/NaN) contaminates its whole pooled row through the
    # 0-weighted lanes of this matmul; nn.MaxPool2d only propagates it to the window holding it.
    o_ref[...] = res2.reshape(B, H_out, W_out).astype(o_ref.dtype)


def _pick_nc_block(nc, h, w, ho, wo, dtype, budget, cores):
    """Largest per-step image batch that fits the generation-aware VMEM budget."""
    isz = jnp.dtype(dtype).itemsize
    per_nc = (
        2 * _pad(h, 8) * _pad(w, 128) * isz          # double-buffered input block
        + 2 * _pad(ho, 8) * _pad(wo, 128) * isz      # double-buffered output block
        + 5 * _pad(ho, 8) * _pad(w, 128) * 4         # hmax / rolls / wmax / matmul LHS @ f32 width
        + 2 * _pad(ho, 8) * _pad(wo, 128) * 4        # f32 result tile (+ cast copy), 128-lane padded
    )
    fixed = _pad(w, 8) * _pad(wo, 128) * 4           # selection matrix
    b = max(1, min(nc, (budget - fixed) // max(per_nc, 1)))

    if cores > 1 and nc > 1:
        # v7x-class: keep >= 2 (ideally an even number of) steps so both TCs get work.
        b = min(b, -(-nc // 2))
        steps = -(-nc // b)
        if steps % 2:
            b = max(1, -(-nc // (steps + 1)))
    else:
        # Single TensorCore: no forced split; just keep a few steps for DMA/compute overlap.
        if b >= nc and nc >= 8:
            b = -(-nc // 4)
    return int(max(1, min(b, nc)))


@jax.jit
def maxpool2d_pallas(x):
    """x: (N, C, H, W) NCHW (PyTorch convention)."""
    N, C, H, W = x.shape
    H_out = (H - KH) // SH + 1
    W_out = (W - KW) // SW + 1
    if H_out <= 0 or W_out <= 0:
        # Degenerate spatial dims (H<3 or W<3): empty output under ceil_mode=False.
        return jnp.zeros((N, C, max(H_out, 0), max(W_out, 0)), x.dtype)

    NC = N * C
    x3 = x.reshape(NC, H, W)                        # free reshape (merges leading dims only)

    budget, vmem_limit, cores = _tpu_config()
    B_nc = _pick_nc_block(NC, H, W, H_out, W_out, x.dtype, budget, cores)
    steps = pl.cdiv(NC, B_nc)

    # Keep bf16 on the MXU natively; everything else goes through f32 (exact for 0/1 weights).
    # TODO(synk): integer inputs take a (possibly lossy for |x|>2^24) float MXU path.
    mm_dtype = jnp.bfloat16 if x.dtype == jnp.bfloat16 else jnp.float32

    if cores > 1 and steps % 2 == 0:
        dim_sem = (pltpu.CORE_PARALLEL,)            # shard the image axis across both TCs
    else:
        dim_sem = ("parallel",)

    out = pl.pallas_call(
        functools.partial(_maxpool3x3_kernel, mm_dtype=mm_dtype),
        out_shape=jax.ShapeDtypeStruct((NC, H_out, W_out), x.dtype),
        grid_spec=pltpu.PrefetchScalarGridSpec(
            num_scalar_prefetch=0,
            grid=(steps,),
            in_specs=[pl.BlockSpec((B_nc, H, W), lambda i: (i, 0, 0))],
            out_specs=pl.BlockSpec((B_nc, H_out, W_out), lambda i: (i, 0, 0)),
        ),
        compiler_params=pltpu.CompilerParams(
            dimension_semantics=dim_sem,
            vmem_limit_bytes=int(vmem_limit),
        ),
    )(x3)

    return out.reshape(N, C, H_out, W_out)


if __name__ == "__main__":
    key = jax.random.PRNGKey(0)
    # Small NCHW input consistent with the module's forward.
    x = jax.random.normal(key, (2, 4, 16, 16), dtype=jnp.float32)

    y = jax.block_until_ready(maxpool2d_pallas(x))

    # Reference (plain JAX) with the same semantics as nn.MaxPool2d(3, ceil_mode=False).
    ref = jax.lax.reduce_window(
        x,
        -jnp.inf,
        jax.lax.max,
        window_dimensions=(1, 1, KH, KW),
        window_strides=(1, 1, SH, SW),
        padding="VALID",
    )
    assert y.shape == ref.shape == (2, 4, 5, 5), (y.shape, ref.shape)
    assert bool(jnp.allclose(y, ref)), "Pallas maxpool mismatch vs reference"

    print("KERNEL_OK")
</pallas_src>

<mosaic_0001>
module attributes {stable_mosaic.version = 11 : i64} {
  func.func @_maxpool3x3_kernel(%arg0: i32, %arg1: memref<2x16x16xf32, #tpu.memory_space<vmem>>, %arg2: memref<2x5x5xf32, #tpu.memory_space<vmem>>) attributes {dimension_semantics = [#tpu.dimension_semantics<parallel>], iteration_bounds = array<i64: 4>, scalar_prefetch = 0 : i64, scratch_operands = 0 : i64, tpu.core_type = #tpu.core_type<tc>, window_params = [{transform_indices = @transform_0, window_bounds = array<i64: 2, 16, 16>}, {transform_indices = @transform_1, window_bounds = array<i64: 2, 5, 5>}]} {
    %c0 = arith.constant 0 : index
    %c0_0 = arith.constant 0 : index
    %c0_1 = arith.constant 0 : index
    %0 = tpu.strided_load %arg1[%c0, %c0_0, %c0_1] {strides = array<i32: 1, 3, 1>} : memref<2x16x16xf32, #tpu.memory_space<vmem>>, vector<2x5x16xf32>
    %c0_2 = arith.constant 0 : index
    %c1 = arith.constant 1 : index
    %c0_3 = arith.constant 0 : index
    %1 = tpu.strided_load %arg1[%c0_2, %c1, %c0_3] {strides = array<i32: 1, 3, 1>} : memref<2x16x16xf32, #tpu.memory_space<vmem>>, vector<2x5x16xf32>
    %c0_4 = arith.constant 0 : index
    %c2 = arith.constant 2 : index
    %c0_5 = arith.constant 0 : index
    %2 = tpu.strided_load %arg1[%c0_4, %c2, %c0_5] {strides = array<i32: 1, 3, 1>} : memref<2x16x16xf32, #tpu.memory_space<vmem>>, vector<2x5x16xf32>
    %3 = arith.maximumf %0, %1 : vector<2x5x16xf32>
    %4 = arith.maximumf %3, %2 : vector<2x5x16xf32>
    %5 = vector.shape_cast %4 : vector<2x5x16xf32> to vector<10x16xf32>
    %c1_i32 = arith.constant 1 : i32
    %6 = tpu.dynamic_rotate %5 by %c1_i32 dim 1 : vector<10x16xf32>, i32 -> vector<10x16xf32>
    %c15_i32 = arith.constant 15 : i32
    %7 = tpu.dynamic_rotate %5 by %c15_i32 dim 1 : vector<10x16xf32>, i32 -> vector<10x16xf32>
    %8 = arith.maximumf %5, %6 : vector<10x16xf32>
    %9 = arith.maximumf %8, %7 : vector<10x16xf32>
    %10 = tpu.iota {dimensions = array<i32: 0>} : vector<16x5xi32>
    %11 = tpu.iota {dimensions = array<i32: 1>} : vector<16x5xi32>
    %c3_i32 = arith.constant 3 : i32
    %12 = vector.broadcast %c3_i32 : i32 to vector<16x5xi32>
    %13 = arith.muli %12, %11 : vector<16x5xi32>
    %c1_i32_6 = arith.constant 1 : i32
    %14 = vector.broadcast %c1_i32_6 : i32 to vector<16x5xi32>
    %15 = arith.addi %13, %14 : vector<16x5xi32>
    %16 = arith.cmpi eq, %10, %15 : vector<16x5xi32>
    %17 = arith.extui %16 : vector<16x5xi1> to vector<16x5xi32>
    %18 = arith.sitofp %17 : vector<16x5xi32> to vector<16x5xf32>
    %cst = arith.constant dense<0.000000e+00> : vector<10x5xf32>
    %19 = tpu.matmul %9, %18, %cst {dimension_numbers = #tpu.dot_dimension_numbers<[1], [0], [0], [1], [0, 0, 1, 1], [], []>} : vector<10x16xf32>, vector<16x5xf32>, vector<10x5xf32> -> vector<10x5xf32>
    %20 = vector.shape_cast %19 : vector<10x5xf32> to vector<2x5x5xf32>
    %c0_7 = arith.constant 0 : index
    %c0_8 = arith.constant 0 : index
    %c0_9 = arith.constant 0 : index
    %21 = vector.load %arg2[%c0_7, %c0_8, %c0_9] : memref<2x5x5xf32, #tpu.memory_space<vmem>>, vector<2x5x5xf32>
    tpu.vector_store %arg2[%c0_7, %c0_8, %c0_9], %20 {strides = array<i32>} : memref<2x5x5xf32, #tpu.memory_space<vmem>>, vector<2x5x5xf32>,
    return
  }
  func.func @transform_0(%arg0: i32) -> (i32, i32, i32) {
    %c0_i32 = arith.constant 0 : i32
    %c0_i32_0 = arith.constant 0 : i32
    %c0_i32_1 = arith.constant 0 : i32
    return %arg0, %c0_i32, %c0_i32_0 : i32, i32, i32
  }
  func.func @transform_1(%arg0: i32) -> (i32, i32, i32) {
    %c0_i32 = arith.constant 0 : i32
    %c0_i32_0 = arith.constant 0 : i32
    %c0_i32_1 = arith.constant 0 : i32
    return %arg0, %c0_i32, %c0_i32_0 : i32, i32, i32
  }
}

</mosaic_0001>

<llo_original>
// kernel: maxpool2d_pallas.1
$region0: #{maxpool2d_pallas.1}
  #allocation0 [shape = 'u32[]', space=smem, size = 0x4, offset = 0x4, fixed_abs, tag = 'smem constant byte address 0x4 - core index']
  #allocation1 [shape = 'u32[144,128]{1,0:T(1,128)}', space=vmem, size = 0x12000, scoped, tag = 'internal scratch']
  %s0 = inlined_call_operand.hbm [shape: f32[8,16,16], index: 0, kind: input, shape index: {}]
  %s1 = inlined_call_operand.vmem [shape: f32[8,5,5], index: 1, kind: output, shape index: {}]
  %s2 = sld [smem:[#allocation0]]
  $region41: #{maxpool2d_pallas.1} parent=0
    _
  %s4 = ssub.s32 1, %s2
  %s5 = scalar_select 0, %s4, %s2
  $region1: #{maxpool2d_pallas.1} parent=0
    #allocation2 [shape = 'u8[32768]{0}', space=vmem, size = 0x8000, scoped, tag = 'input window, operand 0']
    #allocation3 [shape = 's32[2]{0}', space=sflag, size = 0x8, scoped, tag = 'scoped memory for maxpool2d_pallas.1']
    %6 = vsyncpa [#allocation3], 0
    %s7 = scalar_lea.sflag [#allocation3], 1
    %8 = vsyncpa %s7, 0
    loop: start=0, step=1, limit=6
    $region2: #{maxpool2d_pallas.1} parent=1 // loop_pre_header
      _
    $region3: #{maxpool2d_pallas.1} parent=1 // loop_header
      %s10 = sphi 0, %s14
      %p11 = scmp.ge.s32.totalorder %s10, 6
      %s20 = sphi 0, %s22
      %s23 = sphi 0, %s20
      %s24 = sphi 0, %s23
      %s40 = sphi 0, %s24
      %s46 = sphi 0, %s48
      %s49 = sphi 0, %s46
      %s50 = sphi 0, %s49
      %s66 = sphi 0, %s50
    $region4: #{maxpool2d_pallas.1} parent=1 // loop_header_branch
      %13 = sbr.rel (%p11) target = $region8
    $region5: #{maxpool2d_pallas.1} parent=1 // loop_body
      %s15 = ssub.s32 %s10, 1
      %s16 = ssub.s32 %s10, 2
      %s17 = sadd.s32 %s10, 1
      %s18 = ssub.s32 %s10, %s17
      %p19 = scmp.eq.s32.totalorder %s18, 0
      %s21 = sadd.s32 %s20, 1
      %s22 = scalar_select %p19, %s20, %s21
      %p25 = pneg %p19
      %p26 = scmp.eq.s32.totalorder %s10, 3
      %p27 = por %p25, %p26
      %p28 = scmp.ne.s32.totalorder %s20, %s23
      %p29 = scmp.eq.s32.totalorder %s10, 0
      %p30 = por %p28, %p29
      %p31 = scmp.ne.s32.totalorder %s20, %s23
      %p32 = scmp.eq.s32.totalorder %s15, 3
      %p33 = por %p31, %p32
      %p34 = scmp.ne.s32.totalorder %s23, %s24
      %p35 = scmp.eq.s32.totalorder %s15, 0
      %p36 = por %p34, %p35
      %p37 = scmp.ne.s32.totalorder %s23, %s24
      %p38 = scmp.eq.s32.totalorder %s16, 3
      %p39 = por %p37, %p38
      %p41 = scmp.ne.s32.totalorder %s24, %s40
      %p42 = scmp.eq.s32.totalorder %s16, 0
      %p43 = por %p41, %p42
      %s44 = ssub.s32 %s10, %s17
      %p45 = scmp.eq.s32.totalorder %s44, 0
      %s47 = sadd.s32 %s46, 1
      %s48 = scalar_select %p45, %s46, %s47
      %p51 = pneg %p45
      %p52 = scmp.eq.s32.totalorder %s10, 3
      %p53 = por %p51, %p52
      %p54 = scmp.ne.s32.totalorder %s46, %s49
      %p55 = scmp.eq.s32.totalorder %s10, 0
      %p56 = por %p54, %p55
      %p57 = scmp.ne.s32.totalorder %s46, %s49
      %p58 = scmp.eq.s32.totalorder %s15, 3
      %p59 = por %p57, %p58
      %p60 = scmp.ne.s32.totalorder %s49, %s50
      %p61 = scmp.eq.s32.totalorder %s15, 0
      %p62 = por %p60, %p61
      %p63 = scmp.ne.s32.totalorder %s49, %s50
      %p64 = scmp.eq.s32.totalorder %s16, 3
      %p65 = por %p63, %p64
      %p67 = scmp.ne.s32.totalorder %s50, %s66
      %p68 = scmp.eq.s32.totalorder %s16, 0
      %p69 = por %p67, %p68
      %p70 = scmp.le.s32.totalorder 1, %s10
      %p71 = scmp.lt.s32.totalorder %s10, 5
      %p72 = pnand %p70, %p71
      %p73 = pneg %p72
      // Predicated region
      $region9: #{maxpool2d_pallas.1} parent=5 // pred_check
        _
      $region10: #{maxpool2d_pallas.1} parent=5 // pred_check_branch
        %75 = sbr.rel (%p72) target = $region12
      $region11: #{maxpool2d_pallas.1} parent=5 // pred_region
        %s76 = ssub.s32 %s10, 1
      $region12: #{maxpool2d_pallas.1} parent=5 // pred_fallthru
        _
      %p77 = scmp.lt.s32.totalorder %s10, 4
      // Predicated region
      $region13: #{maxpool2d_pallas.1} parent=5 // pred_check
        %p78 = pneg %p77
      $region14: #{maxpool2d_pallas.1} parent=5 // pred_check_branch
        %80 = sbr.rel (%p78) target = $region16
      $region15: #{maxpool2d_pallas.1} parent=5 // pred_region
        // Predicated region
        $region17: #{maxpool2d_pallas.1} parent=15 // pred_check
          %p81 = pneg %p30
        $region18: #{maxpool2d_pallas.1} parent=15 // pred_check_branch
          %83 = sbr.rel (%p81) target = $region20
        $region19: #{maxpool2d_pallas.1} parent=15 // pred_region
          %s84 = sand.u32 %s20, 1
          %s85 = scalar_lea.sflag [#allocation3], %s84
          %s86 = sand.u32 %s20, 1
          %s87 = smul.addr %s86, 32
          %s88 = scalar_lea.vmem [#allocation2], %s87
          %s89 = smul.u32 2, %s10
          %s91 = ssub.s32 512, 512
          %92 = vsyncadd %s85, %s91
          %s93 = smul.addr %s89, 2
          %s94 = smul.addr %s93, 128
          %s95 = scalar_lea.hbm %s0, %s94
          %s96 = sshll.u32 %s88, 4
          %s97 = int_to_ptr.vmem [resolvable:$true] %s96
          %102 = dma.hbm_to_vmem [thread:$0]  %s95, 512, %s97, %s85, 128, 128, 8
        $region20: #{maxpool2d_pallas.1} parent=15 // pred_fallthru
          _
      $region16: #{maxpool2d_pallas.1} parent=5 // pred_fallthru
        _
      %p103 = scmp.le.s32.totalorder 1, %s10
      %p104 = scmp.lt.s32.totalorder %s10, 5
      %p105 = pnand %p103, %p104
      %p106 = pneg %p105
      // Predicated region
      $region21: #{maxpool2d_pallas.1} parent=5 // pred_check
        _
      $region22: #{maxpool2d_pallas.1} parent=5 // pred_check_branch
        %108 = sbr.rel (%p105) target = $region24
      $region23: #{maxpool2d_pallas.1} parent=5 // pred_region
        %s109 = ssub.s32 %s10, 1
        %s110 = sand.u32 %s23, 1
        %s111 = scalar_lea.sflag [#allocation3], %s110
        %s112 = sand.u32 %s23, 1
        %s113 = smul.addr %s112, 32
        %s114 = scalar_lea.vmem [#allocation2], %s113
        // Predicated region
        $region25: #{maxpool2d_pallas.1} parent=23 // pred_check
          %p115 = pneg %p36
        $region26: #{maxpool2d_pallas.1} parent=23 // pred_check_branch
          %117 = sbr.rel (%p115) target = $region28
        $region27: #{maxpool2d_pallas.1} parent=23 // pred_region
          %118 = dma.done %s111, 512
        $region28: #{maxpool2d_pallas.1} parent=23 // pred_fallthru
          _
        %s119 = sand.u32 %s23, 1
        %s120 = scalar_lea.sflag [#allocation3], %s119
        %s121 = sand.u32 %s23, 1
        %s122 = smul.addr %s121, 32
        %s123 = scalar_lea.vmem [#allocation2], %s122
        %p124 = pneg %p36
        %p125 = pneg %p33
        %p126 = pneg %p62
        %p127 = pneg %p59
        %s128 = smul.u32 2, %s15
        %p129 = scmp.lt.s32.totalorder %s128, 7
        %s130 = scalar_select %p129, %s128, 7
        %s131 = smul.addr %s130, 8
        %s132 = scalar_lea.vmem %s1, %s131
        %s133 = smul.u32 2, %s15
        %s134 = smul.u32 2, %s15
        %p135 = scmp.lt.s32.totalorder %s134, 7
        %s136 = scalar_select %p135, %s134, 7
        %s137 = smul.addr %s136, 8
        %s138 = scalar_lea.vmem %s1, %s137
        %s139 = smul.u32 2, %s15
        %v140 = vld [vmem:[%s114] ss:$3 sm:$0x1f]
        %s141 = scalar_lea.vmem %s114, 16 [#allocation2]
        %v142 = vld [vmem:[%s141] ss:$3 sm:$0x1f]
        %s143 = scalar_lea.vmem %s114, 1 [#allocation2]
        %v144 = vld [vmem:[%s143] ss:$3 sm:$0x1f]
        %s145 = scalar_lea.vmem %s114, 17 [#allocation2]
        %v146 = vld [vmem:[%s145] ss:$3 sm:$0x1f]
        %s147 = scalar_lea.vmem %s114, 2 [#allocation2]
        %v148 = vld [vmem:[%s147] ss:$3 sm:$0x1f]
        %s149 = scalar_lea.vmem %s114, 18 [#allocation2]
        %v150 = vld [vmem:[%s149] ss:$3 sm:$0x1f]
        %v151 = vmax.f32 %v140, %v144
        %v152 = vmax.f32 %v142, %v146
        %v153 = vmax.f32 %v151, %v148
        %v154 = vmax.f32 %v152, %v150
        %v157 = vcombine.high %v153, %v153
        %v159 = vunpack.c.l.s4 1966171168
        %v160 = vunpack.c.0.s8 %v159
        %v161 = vlaneseq
        %v162 = vshrl.u32 %v161, 7
        %v163 = vsub.s32 %v160, %v162
        %v164 = vrot.slane %v153, %v163
        %v166 = vunpack.c.l.s4 1966171168
        %v167 = vunpack.c.0.s8 %v166
        %v168 = vlaneseq
        %v169 = vshrl.u32 %v168, 7
        %v170 = vsub.s32 %v167, %v169
        %v171 = vrot.slane %v157, %v170
        %v172 = vcombine.high %v164, %v164
        %v174 = vunpack.c.l.s4 1966171168
        %v175 = vunpack.c.0.s8 %v174
        %v176 = vlaneseq
        %v177 = vshrl.u32 %v176, 7
        %v178 = vsub.s32 %v175, %v177
        %v179 = vrot.slane %v164, %v178
        %v181 = vunpack.c.l.s4 1966171168
        %v182 = vunpack.c.0.s8 %v181
        %v183 = vlaneseq
        %v184 = vshrl.u32 %v183, 7
        %v185 = vsub.s32 %v182, %v184
        %v186 = vrot.slane %v171, %v185
        %v188 = vunpack.c.l.s4 1966171168
        %v189 = vunpack.c.0.s8 %v188
        %v190 = vlaneseq
        %v191 = vshrl.u32 %v190, 7
        %v192 = vsub.s32 %v189, %v191
        %v193 = vrot.slane %v172, %v192
        %v194 = vcombine.high %v179, %v179
        %v195 = vcombine.high %v193, %v193
        %v196 = vcombine.high %v154, %v154
        %v198 = vunpack.c.l.s4 1966171168
        %v199 = vunpack.c.0.s8 %v198
        %v200 = vlaneseq
        %v201 = vshrl.u32 %v200, 7
        %v202 = vsub.s32 %v199, %v201
        %v203 = vrot.slane %v154, %v202
        %v205 = vunpack.c.l.s4 1966171168
        %v206 = vunpack.c.0.s8 %v205
        %v207 = vlaneseq
        %v208 = vshrl.u32 %v207, 7
        %v209 = vsub.s32 %v206, %v208
        %v210 = vrot.slane %v196, %v209
        %v211 = vcombine.high %v203, %v203
        %v213 = vunpack.c.l.s4 1966171168
        %v214 = vunpack.c.0.s8 %v213
        %v215 = vlaneseq
        %v216 = vshrl.u32 %v215, 7
        %v217 = vsub.s32 %v214, %v216
        %v218 = vrot.slane %v203, %v217
        %v220 = vunpack.c.l.s4 1966171168
        %v221 = vunpack.c.0.s8 %v220
        %v222 = vlaneseq
        %v223 = vshrl.u32 %v222, 7
        %v224 = vsub.s32 %v221, %v223
        %v225 = vrot.slane %v210, %v224
        %v227 = vunpack.c.l.s4 1966171168
        %v228 = vunpack.c.0.s8 %v227
        %v229 = vlaneseq
        %v230 = vshrl.u32 %v229, 7
        %v231 = vsub.s32 %v228, %v230
        %v232 = vrot.slane %v211, %v231
        %v233 = vcombine.high %v218, %v218
        %v234 = vcombine.high %v232, %v232
        %v245 = vcombine.low %v179, %v193
        %v246 = vcombine.low %v194, %v195
        %v247 = vcombine.low %v186, %v218
        %v248 = vcombine.low %v232, %v233
        %v250 = vunpack.c.l.s4 1966171168
        %v251 = vunpack.c.0.s8 %v250
        %v252 = vlaneseq
        %v253 = vshrl.u32 %v252, 7
        %v254 = vsub.s32 %v251, %v253
        %v255 = vrot.slane %v245, %v254
        %v257 = vunpack.c.l.s4 1966171168
        %v258 = vunpack.c.0.s8 %v257
        %v259 = vlaneseq
        %v260 = vshrl.u32 %v259, 7
        %v261 = vsub.s32 %v258, %v260
        %v262 = vrot.slane %v246, %v261
        %v264 = vunpack.c.l.s4 1966171168
        %v265 = vunpack.c.0.s8 %v264
        %v266 = vlaneseq
        %v267 = vshrl.u32 %v266, 7
        %v268 = vsub.s32 %v265, %v267
        %v269 = vrot.slane %v247, %v268
        %v271 = vunpack.c.l.s4 1966171168
        %v272 = vunpack.c.0.s8 %v271
        %v273 = vlaneseq
        %v274 = vshrl.u32 %v273, 7
        %v275 = vsub.s32 %v272, %v274
        %v276 = vrot.slane %v248, %v275
        %v277 = vcombine.low %v255, %v262
        %v278 = vcombine.low %v269, %v276
        %v280 = vunpack.c.l.s4 1966171168
        %v281 = vunpack.c.0.s8 %v280
        %v282 = vlaneseq
        %v283 = vshrl.u32 %v282, 7
        %v284 = vsub.s32 %v281, %v283
        %v285 = vrot.slane %v277, %v284
        %v287 = vunpack.c.l.s4 1966171168
        %v288 = vunpack.c.0.s8 %v287
        %v289 = vlaneseq
        %v290 = vshrl.u32 %v289, 7
        %v291 = vsub.s32 %v288, %v290
        %v292 = vrot.slane %v278, %v291
        %v293 = vcombine.low %v285, %v292
        %v294 = vcombine.low %v234, %v225
        %v296 = vunpack.c.l.s4 1966171168
        %v297 = vunpack.c.0.s8 %v296
        %v298 = vlaneseq
        %v299 = vshrl.u32 %v298, 7
        %v300 = vsub.s32 %v297, %v299
        %v301 = vrot.slane %v294, %v300
        %v303 = vunpack.c.l.s4 1966171168
        %v304 = vunpack.c.0.s8 %v303
        %v305 = vlaneseq
        %v306 = vshrl.u32 %v305, 7
        %v307 = vsub.s32 %v304, %v306
        %v308 = vrot.slane %v301, %v307
        %vm311 = vcmask 1047680
        %312 = vrot.lane.b32.xlu0 %v293, 16
        %v313 = vpop.permute.xlu0 %312
        %v314 = vsel %vm311, %v313, %v293
        %315 = vrot.lane.b32.xlu0 %v308, 16
        %v316 = vpop.permute.xlu0 %315
        %v317 = vsel %vm311, %v316, %v308
        %318 = vrot.lane.b32.xlu0 %v314, 16
        %v319 = vpop.permute.xlu0 %318
        %320 = vrot.lane.b32.xlu0 %v317, 16
        %v321 = vpop.permute.xlu0 %320
        %v322 = vsel %vm311, %v319, %v293
        %v323 = vsel %vm311, %v321, %v308
        %v326 = vcombine.high %v322, %v322
        %v328 = vunpack.c.l.s4 1966171168
        %v329 = vunpack.c.0.s8 %v328
        %v330 = vlaneseq
        %v331 = vshrl.u32 %v330, 7
        %v332 = vsub.s32 %v329, %v331
        %v333 = vrot.slane %v322, %v332
        %v335 = vunpack.c.l.s4 1966171168
        %v336 = vunpack.c.0.s8 %v335
        %v337 = vlaneseq
        %v338 = vshrl.u32 %v337, 7
        %v339 = vsub.s32 %v336, %v338
        %v340 = vrot.slane %v326, %v339
        %v341 = vcombine.high %v333, %v333
        %v342 = vcombine.high %v340, %v340
        %v344 = vunpack.c.l.s4 1966171168
        %v345 = vunpack.c.0.s8 %v344
        %v346 = vlaneseq
        %v347 = vshrl.u32 %v346, 7
        %v348 = vsub.s32 %v345, %v347
        %v349 = vrot.slane %v333, %v348
        %v351 = vunpack.c.l.s4 1966171168
        %v352 = vunpack.c.0.s8 %v351
        %v353 = vlaneseq
        %v354 = vshrl.u32 %v353, 7
        %v355 = vsub.s32 %v352, %v354
        %v356 = vrot.slane %v340, %v355
        %v358 = vunpack.c.l.s4 1966171168
        %v359 = vunpack.c.0.s8 %v358
        %v360 = vlaneseq
        %v361 = vshrl.u32 %v360, 7
        %v362 = vsub.s32 %v359, %v361
        %v363 = vrot.slane %v341, %v362
        %v365 = vunpack.c.l.s4 1966171168
        %v366 = vunpack.c.0.s8 %v365
        %v367 = vlaneseq
        %v368 = vshrl.u32 %v367, 7
        %v369 = vsub.s32 %v366, %v368
        %v370 = vrot.slane %v342, %v369
        %v371 = vcombine.high %v349, %v349
        %v372 = vcombine.high %v356, %v356
        %v373 = vcombine.high %v363, %v363
        %v374 = vcombine.high %v370, %v370
        %v376 = vunpack.c.l.s4 1966171168
        %v377 = vunpack.c.0.s8 %v376
        %v378 = vlaneseq
        %v379 = vshrl.u32 %v378, 7
        %v380 = vsub.s32 %v377, %v379
        %v381 = vrot.slane %v323, %v380
        %v382 = vcombine.high %v381, %v381
        %v384 = vunpack.c.l.s4 1966171168
        %v385 = vunpack.c.0.s8 %v384
        %v386 = vlaneseq
        %v387 = vshrl.u32 %v386, 7
        %v388 = vsub.s32 %v385, %v387
        %v389 = vrot.slane %v381, %v388
        %v391 = vunpack.c.l.s4 1966171168
        %v392 = vunpack.c.0.s8 %v391
        %v393 = vlaneseq
        %v394 = vshrl.u32 %v393, 7
        %v395 = vsub.s32 %v392, %v394
        %v396 = vrot.slane %v382, %v395
        %397 = vrot.lane.b32.xlu0 %v349, 113
        %v398 = vpop.permute.xlu0 %397
        %399 = vrot.lane.b32.xlu0 %v363, 113
        %v400 = vpop.permute.xlu0 %399
        %401 = vrot.lane.b32.xlu0 %v371, 113
        %v402 = vpop.permute.xlu0 %401
        %403 = vrot.lane.b32.xlu0 %v373, 113
        %v404 = vpop.permute.xlu0 %403
        %405 = vrot.lane.b32.xlu0 %v356, 113
        %v406 = vpop.permute.xlu0 %405
        %407 = vrot.lane.b32.xlu0 %v370, 113
        %v408 = vpop.permute.xlu0 %407
        %409 = vrot.lane.b32.xlu0 %v372, 113
        %v410 = vpop.permute.xlu0 %409
        %411 = vrot.lane.b32.xlu0 %v374, 113
        %v412 = vpop.permute.xlu0 %411
        %413 = vrot.lane.b32.xlu0 %v389, 113
        %v414 = vpop.permute.xlu0 %413
        %415 = vrot.lane.b32.xlu0 %v396, 113
        %v416 = vpop.permute.xlu0 %415
        %v427 = vmax.f32 %v179, %v398
        %v428 = vmax.f32 %v193, %v400
        %v429 = vmax.f32 %v194, %v402
        %v430 = vmax.f32 %v195, %v404
        %v431 = vmax.f32 %v186, %v406
        %v432 = vmax.f32 %v218, %v408
        %v433 = vmax.f32 %v232, %v410
        %v434 = vmax.f32 %v233, %v412
        %v435 = vmax.f32 %v234, %v414
        %v436 = vmax.f32 %v225, %v416
        %437 = vrot.lane.b32.xlu0 %v349, 127
        %v438 = vpop.permute.xlu0 %437
        %439 = vrot.lane.b32.xlu0 %v363, 127
        %v440 = vpop.permute.xlu0 %439
        %441 = vrot.lane.b32.xlu0 %v371, 127
        %v442 = vpop.permute.xlu0 %441
        %443 = vrot.lane.b32.xlu0 %v373, 127
        %v444 = vpop.permute.xlu0 %443
        %445 = vrot.lane.b32.xlu0 %v356, 127
        %v446 = vpop.permute.xlu0 %445
        %447 = vrot.lane.b32.xlu0 %v370, 127
        %v448 = vpop.permute.xlu0 %447
        %449 = vrot.lane.b32.xlu0 %v372, 127
        %v450 = vpop.permute.xlu0 %449
        %451 = vrot.lane.b32.xlu0 %v374, 127
        %v452 = vpop.permute.xlu0 %451
        %453 = vrot.lane.b32.xlu0 %v389, 127
        %v454 = vpop.permute.xlu0 %453
        %455 = vrot.lane.b32.xlu0 %v396, 127
        %v456 = vpop.permute.xlu0 %455
        %v467 = vmax.f32 %v427, %v438
        %v468 = vmax.f32 %v428, %v440
        %v469 = vmax.f32 %v429, %v442
        %v470 = vmax.f32 %v430, %v444
        %v471 = vmax.f32 %v431, %v446
        %v472 = vmax.f32 %v432, %v448
        %v473 = vmax.f32 %v433, %v450
        %v474 = vmax.f32 %v434, %v452
        %v475 = vmax.f32 %v435, %v454
        %v476 = vmax.f32 %v436, %v456
        %v477 = vlaneseq
        %v478 = vshrl.u32 %v477, 7
        %v479 = vadd.s32 %v478, 8
        %v480 = vlaneseq
        %v481 = vand.u32 %v480, 127
        %v482 = vmul.u32 %v481, 3
        %v483 = vadd.s32 %v482, 1
        %vm484 = vcmp.eq.s32.totalorder %v478, %v483
        %vm485 = vcmp.eq.s32.totalorder %v479, %v483
        %v486 = vsel %vm484, 1, 0
        %v487 = vsel %vm485, 1, 0
        %v488 = vcvt.s32.f32 %v486
        %v489 = vcvt.s32.f32 %v487
        %v500 = vcombine.low %v467, %v468
        %v501 = vcombine.low %v469, %v470
        %v502 = vcombine.low %v471, %v472
        %v503 = vcombine.low %v473, %v474
        %v505 = vunpack.c.l.s4 1966171168
        %v506 = vunpack.c.0.s8 %v505
        %v507 = vlaneseq
        %v508 = vshrl.u32 %v507, 7
        %v509 = vsub.s32 %v506, %v508
        %v510 = vrot.slane %v500, %v509
        %v512 = vunpack.c.l.s4 1966171168
        %v513 = vunpack.c.0.s8 %v512
        %v514 = vlaneseq
        %v515 = vshrl.u32 %v514, 7
        %v516 = vsub.s32 %v513, %v515
        %v517 = vrot.slane %v501, %v516
        %v519 = vunpack.c.l.s4 1966171168
        %v520 = vunpack.c.0.s8 %v519
        %v521 = vlaneseq
        %v522 = vshrl.u32 %v521, 7
        %v523 = vsub.s32 %v520, %v522
        %v524 = vrot.slane %v502, %v523
        %v526 = vunpack.c.l.s4 1966171168
        %v527 = vunpack.c.0.s8 %v526
        %v528 = vlaneseq
        %v529 = vshrl.u32 %v528, 7
        %v530 = vsub.s32 %v527, %v529
        %v531 = vrot.slane %v503, %v530
        %v532 = vcombine.low %v510, %v517
        %v533 = vcombine.low %v524, %v531
        %v535 = vunpack.c.l.s4 1966171168
        %v536 = vunpack.c.0.s8 %v535
        %v537 = vlaneseq
        %v538 = vshrl.u32 %v537, 7
        %v539 = vsub.s32 %v536, %v538
        %v540 = vrot.slane %v532, %v539
        %v542 = vunpack.c.l.s4 1966171168
        %v543 = vunpack.c.0.s8 %v542
        %v544 = vlaneseq
        %v545 = vshrl.u32 %v544, 7
        %v546 = vsub.s32 %v543, %v545
        %v547 = vrot.slane %v533, %v546
        %v548 = vcombine.low %v540, %v547
        %v549 = vcombine.low %v475, %v476
        %v551 = vunpack.c.l.s4 1966171168
        %v552 = vunpack.c.0.s8 %v551
        %v553 = vlaneseq
        %v554 = vshrl.u32 %v553, 7
        %v555 = vsub.s32 %v552, %v554
        %v556 = vrot.slane %v549, %v555
        %v558 = vunpack.c.l.s4 1966171168
        %v559 = vunpack.c.0.s8 %v558
        %v560 = vlaneseq
        %v561 = vshrl.u32 %v560, 7
        %v562 = vsub.s32 %v559, %v561
        %v563 = vrot.slane %v556, %v562
        %vm564 = vcmask 130048
        %v565 = vsel %vm564, %v548, 0
        %v567 = vsel %vm564, %v563, 0
        %569 = vmatprep.subr.mxu0 0.0
        %570 = vmatpush1.msra.mxu0 %v488
        %571 = vmatprep.subr.mxu0 0.0
        %572 = vmatpush1.msra.mxu0 %v489
        %573 = vmatprep.subr.mxu0 0.0
        %574 = vmatpush1.msra.mxu0 0.0
        %575 = vmatprep.subr.mxu0 0.0
        %576 = vmatpush1.msra.mxu0 0.0
        %577 = vmatprep.subr.mxu0 0.0
        %578 = vmatpush1.msra.mxu0 0.0
        %579 = vmatprep.subr.mxu0 0.0
        %580 = vmatpush1.msra.mxu0 0.0
        %581 = vmatprep.subr.mxu0 0.0
        %582 = vmatpush1.msra.mxu0 0.0
        %583 = vmatprep.subr.mxu0 0.0
        %584 = vmatpush1.msra.mxu0 0.0
        %585 = vmatprep.subr.mxu0 0.0
        %586 = vmatpush1.msra.mxu0 0.0
        %587 = vmatprep.subr.mxu0 0.0
        %588 = vmatpush1.msra.mxu0 0.0
        %589 = vmatprep.subr.mxu0 0.0
        %590 = vmatpush1.msra.mxu0 0.0
        %591 = vmatprep.subr.mxu0 0.0
        %592 = vmatpush1.msra.mxu0 0.0
        %593 = vmatprep.subr.mxu0 0.0
        %594 = vmatpush1.msra.mxu0 0.0
        %595 = vmatprep.subr.mxu0 0.0
        %596 = vmatpush1.msra.mxu0 0.0
        %597 = vmatprep.subr.mxu0 0.0
        %598 = vmatpush1.msra.mxu0 0.0
        %599 = vmatprep.subr.mxu0 0.0
        %600 = vmatpush1.msra.mxu0 0.0
        %601 = vmatprep.subr.mxu0 0.0
        %602 = vmatpush1.msra.mxu0 0.0
        %603 = vmatprep.subr.mxu0 0.0
        %604 = vmatpush1.msra.mxu0 0.0
        %605 = vmatprep.subr.mxu0 0.0
        %606 = vmatpush1.msra.mxu0 0.0
        %607 = vmatprep.subr.mxu0 0.0
        %608 = vmatpush1.msra.mxu0 0.0
        %609 = vmatprep.subr.mxu0 0.0
        %610 = vmatpush1.msra.mxu0 0.0
        %611 = vmatprep.subr.mxu0 0.0
        %612 = vmatpush1.msra.mxu0 0.0
        %613 = vmatprep.subr.mxu0 0.0
        %614 = vmatpush1.msra.mxu0 0.0
        %615 = vmatprep.subr.mxu0 0.0
        %616 = vmatpush1.msra.mxu0 0.0
        %617 = vmatprep.subr.mxu0 0.0
        %618 = vmatpush1.msra.mxu0 0.0
        %619 = vmatprep.subr.mxu0 0.0
        %620 = vmatpush1.msra.mxu0 0.0
        %621 = vmatprep.subr.mxu0 0.0
        %622 = vmatpush1.msra.mxu0 0.0
        %623 = vmatprep.subr.mxu0 0.0
        %624 = vmatpush1.msra.mxu0 0.0
        %625 = vmatprep.subr.mxu0 0.0
        %626 = vmatpush1.msra.mxu0 0.0
        %627 = vmatprep.subr.mxu0 0.0
        %628 = vmatpush1.msra.mxu0 0.0
        %629 = vmatprep.subr.mxu0 0.0
        %630 = vmatpush1.msra.mxu0 0.0
        %631 = vmatprep.subr.mxu0 0.0
        %632 = vmatpush1.msra.mxu0 0.0
        %633 = vmatprep.mubr.f32.mxu0 0.0
        %634 = vmatmul.mubr.f32.gmra.mrb[0].mxu0 %v565
        %v635 = vpop.f32.mrb[0].mxu0
        %v636 = vadd.f32 0.0, %v635
        %v637 = vpop.f32.mrb[0].mxu0
        %638 = vmatprep.mubr.f32.mxu0 0.0
        %639 = vmatmul.mubr.f32.gmra.mrb[0].mxu0 %v567
        %v640 = vpop.f32.mrb[0].mxu0
        %v641 = vadd.f32 0.0, %v640
        %v642 = vpop.f32.mrb[0].mxu0
        %643 = vdwg.mxu0
        %v646 = vcombine.high %v636, %v636
        %v648 = vunpack.c.l.s4 1966171168
        %v649 = vunpack.c.0.s8 %v648
        %v650 = vlaneseq
        %v651 = vshrl.u32 %v650, 7
        %v652 = vsub.s32 %v649, %v651
        %v653 = vrot.slane %v636, %v652
        %v655 = vunpack.c.l.s4 1966171168
        %v656 = vunpack.c.0.s8 %v655
        %v657 = vlaneseq
        %v658 = vshrl.u32 %v657, 7
        %v659 = vsub.s32 %v656, %v658
        %v660 = vrot.slane %v646, %v659
        %v661 = vcombine.high %v653, %v653
        %v662 = vcombine.high %v660, %v660
        %v664 = vunpack.c.l.s4 1966171168
        %v665 = vunpack.c.0.s8 %v664
        %v666 = vlaneseq
        %v667 = vshrl.u32 %v666, 7
        %v668 = vsub.s32 %v665, %v667
        %v669 = vrot.slane %v653, %v668
        %v671 = vunpack.c.l.s4 1966171168
        %v672 = vunpack.c.0.s8 %v671
        %v673 = vlaneseq
        %v674 = vshrl.u32 %v673, 7
        %v675 = vsub.s32 %v672, %v674
        %v676 = vrot.slane %v660, %v675
        %v678 = vunpack.c.l.s4 1966171168
        %v679 = vunpack.c.0.s8 %v678
        %v680 = vlaneseq
        %v681 = vshrl.u32 %v680, 7
        %v682 = vsub.s32 %v679, %v681
        %v683 = vrot.slane %v661, %v682
        %v685 = vunpack.c.l.s4 1966171168
        %v686 = vunpack.c.0.s8 %v685
        %v687 = vlaneseq
        %v688 = vshrl.u32 %v687, 7
        %v689 = vsub.s32 %v686, %v688
        %v690 = vrot.slane %v662, %v689
        %v691 = vcombine.high %v669, %v669
        %v692 = vcombine.high %v676, %v676
        %v693 = vcombine.high %v683, %v683
        %v694 = vcombine.high %v690, %v690
        %v696 = vunpack.c.l.s4 1966171168
        %v697 = vunpack.c.0.s8 %v696
        %v698 = vlaneseq
        %v699 = vshrl.u32 %v698, 7
        %v700 = vsub.s32 %v697, %v699
        %v701 = vrot.slane %v641, %v700
        %v702 = vcombine.high %v701, %v701
        %v704 = vunpack.c.l.s4 1966171168
        %v705 = vunpack.c.0.s8 %v704
        %v706 = vlaneseq
        %v707 = vshrl.u32 %v706, 7
        %v708 = vsub.s32 %v705, %v707
        %v709 = vrot.slane %v701, %v708
        %v711 = vunpack.c.l.s4 1966171168
        %v712 = vunpack.c.0.s8 %v711
        %v713 = vlaneseq
        %v714 = vshrl.u32 %v713, 7
        %v715 = vsub.s32 %v712, %v714
        %v716 = vrot.slane %v702, %v715
        %v717 = vcombine.low %v669, %v683
        %v718 = vcombine.low %v691, %v693
        %v720 = vunpack.c.l.s4 1966171168
        %v721 = vunpack.c.0.s8 %v720
        %v722 = vlaneseq
        %v723 = vshrl.u32 %v722, 7
        %v724 = vsub.s32 %v721, %v723
        %v725 = vrot.slane %v717, %v724
        %v727 = vunpack.c.l.s4 1966171168
        %v728 = vunpack.c.0.s8 %v727
        %v729 = vlaneseq
        %v730 = vshrl.u32 %v729, 7
        %v731 = vsub.s32 %v728, %v730
        %v732 = vrot.slane %v718, %v731
        %v734 = vunpack.c.l.s4 1966171168
        %v735 = vunpack.c.0.s8 %v734
        %v736 = vlaneseq
        %v737 = vshrl.u32 %v736, 7
        %v738 = vsub.s32 %v735, %v737
        %v739 = vrot.slane %v676, %v738
        %v740 = vcombine.low %v725, %v732
        %v742 = vunpack.c.l.s4 1966171168
        %v743 = vunpack.c.0.s8 %v742
        %v744 = vlaneseq
        %v745 = vshrl.u32 %v744, 7
        %v746 = vsub.s32 %v743, %v745
        %v747 = vrot.slane %v740, %v746
        %v749 = vunpack.c.l.s4 1966171168
        %v750 = vunpack.c.0.s8 %v749
        %v751 = vlaneseq
        %v752 = vshrl.u32 %v751, 7
        %v753 = vsub.s32 %v750, %v752
        %v754 = vrot.slane %v739, %v753
        %v755 = vcombine.low %v747, %v754
        %v756 = vcombine.low %v690, %v692
        %v757 = vcombine.low %v694, %v709
        %v759 = vunpack.c.l.s4 1966171168
        %v760 = vunpack.c.0.s8 %v759
        %v761 = vlaneseq
        %v762 = vshrl.u32 %v761, 7
        %v763 = vsub.s32 %v760, %v762
        %v764 = vrot.slane %v756, %v763
        %v766 = vunpack.c.l.s4 1966171168
        %v767 = vunpack.c.0.s8 %v766
        %v768 = vlaneseq
        %v769 = vshrl.u32 %v768, 7
        %v770 = vsub.s32 %v767, %v769
        %v771 = vrot.slane %v757, %v770
        %v773 = vunpack.c.l.s4 1966171168
        %v774 = vunpack.c.0.s8 %v773
        %v775 = vlaneseq
        %v776 = vshrl.u32 %v775, 7
        %v777 = vsub.s32 %v774, %v776
        %v778 = vrot.slane %v716, %v777
        %v779 = vcombine.low %v764, %v771
        %v781 = vunpack.c.l.s4 1966171168
        %v782 = vunpack.c.0.s8 %v781
        %v783 = vlaneseq
        %v784 = vshrl.u32 %v783, 7
        %v785 = vsub.s32 %v782, %v784
        %v786 = vrot.slane %v779, %v785
        %v788 = vunpack.c.l.s4 1966171168
        %v789 = vunpack.c.0.s8 %v788
        %v790 = vlaneseq
        %v791 = vshrl.u32 %v790, 7
        %v792 = vsub.s32 %v789, %v791
        %v793 = vrot.slane %v778, %v792
        %v794 = vcombine.low %v786, %v793
        %vm797 = vcmask 36864
        %798 = vst.msk [vmem:[%s138] sm:$0x1f] %vm797, %v755
        %799 = vst.msk [vmem:[%s138 + $0x8] sm:$0x1f] %vm797, %v794
        %s800 = smul.u32 2, %s15
        %p801 = scmp.lt.s32.totalorder %s800, 7
        %s802 = scalar_select %p801, %s800, 7
        %s803 = smul.addr %s802, 8
        %s804 = scalar_lea.vmem %s1, %s803
        // Predicated region
        $region29: #{maxpool2d_pallas.1} parent=23 // pred_check
          %p805 = pneg %p59
        $region30: #{maxpool2d_pallas.1} parent=23 // pred_check_branch
          %807 = sbr.rel (%p805) target = $region32
        $region31: #{maxpool2d_pallas.1} parent=23 // pred_region
          %s808 = smul.u32 2, %s15
        $region32: #{maxpool2d_pallas.1} parent=23 // pred_fallthru
          _
      $region24: #{maxpool2d_pallas.1} parent=5 // pred_fallthru
        _
      %p809 = scmp.le.s32.totalorder 2, %s10
      // Predicated region
      $region33: #{maxpool2d_pallas.1} parent=5 // pred_check
        %p810 = pneg %p809
      $region34: #{maxpool2d_pallas.1} parent=5 // pred_check_branch
        %812 = sbr.rel (%p810) target = $region36
      $region35: #{maxpool2d_pallas.1} parent=5 // pred_region
        %s813 = ssub.s32 %s10, 2
        // Predicated region
        $region37: #{maxpool2d_pallas.1} parent=35 // pred_check
          %p814 = pneg %p65
        $region38: #{maxpool2d_pallas.1} parent=35 // pred_check_branch
          %816 = sbr.rel (%p814) target = $region40
        $region39: #{maxpool2d_pallas.1} parent=35 // pred_region
          %s817 = smul.u32 2, %s16
          %p818 = scmp.lt.s32.totalorder %s817, 7
          %s819 = scalar_select %p818, %s817, 7
          %s820 = smul.addr %s819, 8
          %s821 = scalar_lea.vmem %s1, %s820
        $region40: #{maxpool2d_pallas.1} parent=35 // pred_fallthru
          _
      $region36: #{maxpool2d_pallas.1} parent=5 // pred_fallthru
        _
    $region6: #{maxpool2d_pallas.1} parent=1 // loop_footer
      %s14 = sadd.s32 1, %s10
    $region7: #{maxpool2d_pallas.1} parent=1 // loop_footer_branch
      %9 = sbr.rel target = $region3
    $region8: #{maxpool2d_pallas.1} parent=1 // loop_exit
      _
    %822 = vsyncpa [#allocation3], 1
    %s823 = scalar_lea.sflag [#allocation3], 1
    %824 = vsyncpa %s823, 1

</llo_original>
